<compile_context>
chip_gen: v7x
topology: tpu7x:2x2x1
jax: 0.10.0
libtpu: 0.0.40
codegen_flags: <defaults>
</compile_context>

<pallas_src>
import math

import jax
import jax.numpy as jnp
from jax.experimental import pallas as pl
from jax.experimental.pallas import tpu as pltpu


def _round_up(n, m):
    return ((n + m - 1) // m) * m


def ffn_kernel(x_ref, w1_ref, b1_ref, w2_ref, b2_ref, o_ref, acc_ref):
    # Grid: (row tiles i ["parallel"], d_ff tiles k ["arbitrary" reduction, last]).
    # x_ref:  (tm, dm_p)  x.dtype      w1_ref: (dm_p, tff) bf16
    # b1_ref: (1, tff)    f32          w2_ref: (tff, dm_p) bf16
    # b2_ref: (1, dm_p)   f32          o_ref:  (tm, dm_p)  out_dtype
    # acc_ref:(tm, dm_p)  f32 scratch accumulator, lives across the k axis.
    k = pl.program_id(1)

    @pl.when(k == 0)
    def _init():
        acc_ref[...] = jnp.zeros_like(acc_ref)

    x = x_ref[...].astype(jnp.bfloat16)            # in-kernel cast, no extra HBM pass
    h = jnp.dot(x, w1_ref[...], preferred_element_type=jnp.float32)
    h = jnp.maximum(h + b1_ref[...], 0.0)          # bias + ReLU in f32 (VPU)
    acc_ref[...] += jnp.dot(h.astype(jnp.bfloat16), w2_ref[...],
                            preferred_element_type=jnp.float32)

    @pl.when(k == pl.num_programs(1) - 1)
    def _finalize():
        o_ref[...] = (acc_ref[...] + b2_ref[...]).astype(o_ref.dtype)


def _choose_tm(M, tm_max, gran):
    """Row tile: multiple of `gran`, <= tm_max, preferring >= 2 row-grid steps."""
    tm_max = max(gran, (tm_max // gran) * gran)
    tm = min(tm_max, _round_up(M, gran))
    if _round_up(M, tm) // tm < 2 and M > gran:
        # Give v7x's two TensorCores something to split along the "parallel" axis.
        tm = max(gran, _round_up((M + 1) // 2, gran))
    return tm


def _choose_tff(dff_p, tff_max, align):
    """d_ff tile: multiple of `align` that divides dff_p, <= tff_max."""
    tff = max(align, min((tff_max // align) * align, dff_p))
    while dff_p % tff != 0:
        tff -= align
    return tff


def _default_vmem_limit_bytes():
    # ~75% of this generation's per-core VMEM (~48 MiB on v7x, ~96 MiB on
    # v5e/v6e), leaving headroom for compiler scratch / semaphores / buffers.
    cap = 64 << 20
    try:
        cap = int(getattr(pltpu.get_tpu_info(), "vmem_capacity_bytes", cap))
    except Exception:
        pass
    return max(32 << 20, (cap * 3) // 4)


def _build_call(M_p, dm_p, dff_p, tm, tff, x_dtype, out_dtype, vmem_limit_bytes):
    grid_m = M_p // tm
    grid_k = dff_p // tff
    flops = 4 * M_p * dm_p * dff_p  # two matmuls
    bytes_accessed = (
        M_p * dm_p * jnp.dtype(x_dtype).itemsize           # x read
        + grid_m * (2 * dm_p * dff_p * 2)                   # W1 + W2 (bf16), refetched per row tile
        + grid_m * (dff_p + dm_p) * 4                       # biases
        + M_p * dm_p * jnp.dtype(out_dtype).itemsize)       # output write

    return pl.pallas_call(
        ffn_kernel,
        out_shape=jax.ShapeDtypeStruct((M_p, dm_p), out_dtype),
        grid_spec=pltpu.PrefetchScalarGridSpec(
            num_scalar_prefetch=0,
            grid=(grid_m, grid_k),                           # reduction axis last
            in_specs=[
                pl.BlockSpec((tm, dm_p), lambda i, k: (i, 0)),   # x rows (constant over k)
                pl.BlockSpec((dm_p, tff), lambda i, k: (0, k)),  # W1 column tile (streamed)
                pl.BlockSpec((1, tff), lambda i, k: (0, k)),     # b1 tile
                pl.BlockSpec((tff, dm_p), lambda i, k: (k, 0)),  # W2 row tile (streamed)
                pl.BlockSpec((1, dm_p), lambda i, k: (0, 0)),    # b2
            ],
            out_specs=pl.BlockSpec((tm, dm_p), lambda i, k: (i, 0)),
            scratch_shapes=[pltpu.VMEM((tm, dm_p), jnp.float32)],
        ),
        compiler_params=pltpu.CompilerParams(
            dimension_semantics=("parallel", "arbitrary"),
            vmem_limit_bytes=vmem_limit_bytes,
        ),
        cost_estimate=pl.CostEstimate(
            flops=flops, transcendentals=0, bytes_accessed=bytes_accessed),
    )


def make_positionwise_feed_forward(w1, b1, w2, b2, *, tm=256, tff=512, align=256,
                                   out_dtype=None, vmem_limit_bytes=None):
    """Prepare (pad + bf16-cast) the FFN params once; return apply(x).

    apply(x) == relu(x @ w1 + b1) @ w2 + b2  (PyTorch PositionwiseFeedForward).
    """
    d_model, d_ff = w1.shape
    assert b1.shape == (d_ff,) and w2.shape == (d_ff, d_model) and b2.shape == (d_model,)

    # Lane-dense, 256-aligned feature dims (full minor-dim MXU use on v6e/v7x).
    dm_p = _round_up(d_model, align)
    dff_p = _round_up(d_ff, align)
    tff_sel = _choose_tff(dff_p, tff, align)

    # One-time parameter pad + bf16 cast, reused across calls (no per-call
    # weight HBM round trip).  Zero padding keeps the math exact: padded d_ff
    # columns give relu(0 + 0) = 0 which contributes nothing to the output.
    w1_p = jnp.pad(w1.astype(jnp.bfloat16), ((0, dm_p - d_model), (0, dff_p - d_ff)))
    w2_p = jnp.pad(w2.astype(jnp.bfloat16), ((0, dff_p - d_ff), (0, dm_p - d_model)))
    b1_p = jnp.pad(b1.astype(jnp.float32), (0, dff_p - d_ff)).reshape(1, dff_p)
    b2_p = jnp.pad(b2.astype(jnp.float32), (0, dm_p - d_model)).reshape(1, dm_p)

    if vmem_limit_bytes is None:
        vmem_limit_bytes = _default_vmem_limit_bytes()

    def apply(x):
        assert x.shape[-1] == d_model, f"expected last dim {d_model}, got {x.shape}"
        lead = x.shape[:-1]
        M = int(math.prod(lead))
        x_dtype = x.dtype
        odt = jnp.dtype(out_dtype) if out_dtype is not None else x_dtype

        gran = 8 if jnp.dtype(x_dtype).itemsize >= 4 else 16   # sublane packing
        tm_sel = _choose_tm(M, tm, gran)
        M_p = _round_up(M, tm_sel)

        # No dtype cast here (done in-kernel); pad only if shapes are misaligned.
        x2d = x.reshape(M, d_model)
        if M_p != M or dm_p != d_model:
            x2d = jnp.pad(x2d, ((0, M_p - M), (0, dm_p - d_model)))

        call = _build_call(M_p, dm_p, dff_p, tm_sel, tff_sel, x_dtype, odt,
                           vmem_limit_bytes)
        out2d = call(x2d, w1_p, b1_p, w2_p, b2_p)
        return out2d[:M, :d_model].reshape(*lead, d_model)

    return apply


def positionwise_feed_forward(x, w1, b1, w2, b2, **kwargs):
    """One-shot convenience wrapper; prefer make_positionwise_feed_forward for reuse."""
    return make_positionwise_feed_forward(w1, b1, w2, b2, **kwargs)(x)


if __name__ == "__main__":
    # settings = {'d_model': 32, 'd_ff': 64}; small shapes for the example.
    batch, seq, d_model, d_ff = 2, 8, 32, 64

    key = jax.random.PRNGKey(0)
    kx, kw1, kb1, kw2, kb2 = jax.random.split(key, 5)

    x = jax.random.normal(kx, (batch, seq, d_model), dtype=jnp.float32)

    # Deterministic params mimicking nn.Linear's uniform(-1/sqrt(fan_in), 1/sqrt(fan_in)).
    lim1 = 1.0 / (d_model ** 0.5)
    lim2 = 1.0 / (d_ff ** 0.5)
    w1 = jax.random.uniform(kw1, (d_model, d_ff), jnp.float32, -lim1, lim1)
    b1 = jax.random.uniform(kb1, (d_ff,), jnp.float32, -lim1, lim1)
    w2 = jax.random.uniform(kw2, (d_ff, d_model), jnp.float32, -lim2, lim2)
    b2 = jax.random.uniform(kb2, (d_model,), jnp.float32, -lim2, lim2)

    ffn = make_positionwise_feed_forward(w1, b1, w2, b2)   # params prepared once
    out = jax.block_until_ready(ffn(x))

    # Cross-check against a plain-JAX f32 reference (bf16 matmuls => looser tol).
    ref = jnp.maximum(x @ w1 + b1, 0.0) @ w2 + b2
    assert out.shape == (batch, seq, d_model)
    assert jnp.allclose(out, ref, atol=3e-2, rtol=3e-2), \
        f"max abs err = {jnp.max(jnp.abs(out - ref))}"

    print("KERNEL_OK")
</pallas_src>

<mosaic_0001>
module attributes {stable_mosaic.version = 11 : i64} {
  func.func @ffn_kernel(%arg0: i32, %arg1: i32, %arg2: memref<8x256xf32, #tpu.memory_space<vmem>>, %arg3: memref<256x256xbf16, #tpu.memory_space<vmem>>, %arg4: memref<1x256xf32, #tpu.memory_space<vmem>>, %arg5: memref<256x256xbf16, #tpu.memory_space<vmem>>, %arg6: memref<1x256xf32, #tpu.memory_space<vmem>>, %arg7: memref<8x256xf32, #tpu.memory_space<vmem>>, %arg8: memref<8x256xf32, #tpu.memory_space<vmem>>) attributes {dimension_semantics = [#tpu.dimension_semantics<parallel>, #tpu.dimension_semantics<arbitrary>], iteration_bounds = array<i64: 2, 1>, scalar_prefetch = 0 : i64, scratch_operands = 1 : i64, tpu.core_type = #tpu.core_type<tc>, window_params = [{transform_indices = @transform_0, window_bounds = array<i64: 8, 256>}, {transform_indices = @transform_1, window_bounds = array<i64: 256, 256>}, {transform_indices = @transform_2, window_bounds = array<i64: 1, 256>}, {transform_indices = @transform_3, window_bounds = array<i64: 256, 256>}, {pipeline_mode = #tpu.pipeline_mode<synchronous>, transform_indices = @transform_4, window_bounds = array<i64: 1, 256>}, {transform_indices = @transform_5, window_bounds = array<i64: 8, 256>}]} {
    %c0_i32 = arith.constant 0 : i32
    %0 = arith.cmpi eq, %arg1, %c0_i32 : i32
    %1 = arith.extui %0 : i1 to i32
    %c0_i32_0 = arith.constant 0 : i32
    %2 = arith.cmpi ne, %1, %c0_i32_0 : i32
    scf.if %2 {
      %cst_16 = arith.constant 0.000000e+00 : f32
      %21 = vector.broadcast %cst_16 : f32 to vector<8x256xf32>
      %c0_17 = arith.constant 0 : index
      %c0_18 = arith.constant 0 : index
      %22 = vector.load %arg8[%c0_17, %c0_18] : memref<8x256xf32, #tpu.memory_space<vmem>>, vector<8x256xf32>
      tpu.vector_store %arg8[%c0_17, %c0_18], %21 {strides = array<i32>} : memref<8x256xf32, #tpu.memory_space<vmem>>, vector<8x256xf32>,
    } else {
    }
    %c0 = arith.constant 0 : index
    %c0_1 = arith.constant 0 : index
    %3 = vector.load %arg2[%c0, %c0_1] : memref<8x256xf32, #tpu.memory_space<vmem>>, vector<8x256xf32>
    %4 = arith.truncf %3 : vector<8x256xf32> to vector<8x256xbf16>
    %c0_2 = arith.constant 0 : index
    %c0_3 = arith.constant 0 : index
    %5 = vector.load %arg3[%c0_2, %c0_3] : memref<256x256xbf16, #tpu.memory_space<vmem>>, vector<256x256xbf16>
    %cst = arith.constant dense<0.000000e+00> : vector<8x256xf32>
    %6 = tpu.matmul %4, %5, %cst {dimension_numbers = #tpu.dot_dimension_numbers<[1], [0], [0], [1], [0, 0, 1, 1], [], []>} : vector<8x256xbf16>, vector<256x256xbf16>, vector<8x256xf32> -> vector<8x256xf32>
    %c0_4 = arith.constant 0 : index
    %c0_5 = arith.constant 0 : index
    %7 = vector.load %arg4[%c0_4, %c0_5] : memref<1x256xf32, #tpu.memory_space<vmem>>, vector<1x256xf32>
    %8 = vector.broadcast %7 : vector<1x256xf32> to vector<8x256xf32>
    %9 = arith.addf %6, %8 : vector<8x256xf32>
    %cst_6 = arith.constant 0.000000e+00 : f32
    %10 = vector.broadcast %cst_6 : f32 to vector<8x256xf32>
    %11 = arith.maximumf %9, %10 : vector<8x256xf32>
    %c0_7 = arith.constant 0 : index
    %c0_8 = arith.constant 0 : index
    %12 = vector.load %arg8[%c0_7, %c0_8] : memref<8x256xf32, #tpu.memory_space<vmem>>, vector<8x256xf32>
    %13 = arith.truncf %11 : vector<8x256xf32> to vector<8x256xbf16>
    %c0_9 = arith.constant 0 : index
    %c0_10 = arith.constant 0 : index
    %14 = vector.load %arg5[%c0_9, %c0_10] : memref<256x256xbf16, #tpu.memory_space<vmem>>, vector<256x256xbf16>
    %cst_11 = arith.constant dense<0.000000e+00> : vector<8x256xf32>
    %15 = tpu.matmul %13, %14, %cst_11 {dimension_numbers = #tpu.dot_dimension_numbers<[1], [0], [0], [1], [0, 0, 1, 1], [], []>} : vector<8x256xbf16>, vector<256x256xbf16>, vector<8x256xf32> -> vector<8x256xf32>
    %16 = arith.addf %12, %15 : vector<8x256xf32>
    %c0_12 = arith.constant 0 : index
    %c0_13 = arith.constant 0 : index
    %17 = vector.load %arg8[%c0_12, %c0_13] : memref<8x256xf32, #tpu.memory_space<vmem>>, vector<8x256xf32>
    tpu.vector_store %arg8[%c0_12, %c0_13], %16 {strides = array<i32>} : memref<8x256xf32, #tpu.memory_space<vmem>>, vector<8x256xf32>,
    %c0_i32_14 = arith.constant 0 : i32
    %18 = arith.cmpi eq, %arg1, %c0_i32_14 : i32
    %19 = arith.extui %18 : i1 to i32
    %c0_i32_15 = arith.constant 0 : i32
    %20 = arith.cmpi ne, %19, %c0_i32_15 : i32
    scf.if %20 {
      %c0_16 = arith.constant 0 : index
      %c0_17 = arith.constant 0 : index
      %21 = vector.load %arg8[%c0_16, %c0_17] : memref<8x256xf32, #tpu.memory_space<vmem>>, vector<8x256xf32>
      %c0_18 = arith.constant 0 : index
      %c0_19 = arith.constant 0 : index
      %22 = vector.load %arg6[%c0_18, %c0_19] : memref<1x256xf32, #tpu.memory_space<vmem>>, vector<1x256xf32>
      %23 = vector.broadcast %22 : vector<1x256xf32> to vector<8x256xf32>
      %24 = arith.addf %21, %23 : vector<8x256xf32>
      %c0_20 = arith.constant 0 : index
      %c0_21 = arith.constant 0 : index
      %25 = vector.load %arg7[%c0_20, %c0_21] : memref<8x256xf32, #tpu.memory_space<vmem>>, vector<8x256xf32>
      tpu.vector_store %arg7[%c0_20, %c0_21], %24 {strides = array<i32>} : memref<8x256xf32, #tpu.memory_space<vmem>>, vector<8x256xf32>,
    } else {
    }
    return
  }
  func.func @transform_0(%arg0: i32, %arg1: i32) -> (i32, i32) {
    %c0_i32 = arith.constant 0 : i32
    %c0_i32_0 = arith.constant 0 : i32
    return %arg0, %c0_i32 : i32, i32
  }
  func.func @transform_1(%arg0: i32, %arg1: i32) -> (i32, i32) {
    %c0_i32 = arith.constant 0 : i32
    %c0_i32_0 = arith.constant 0 : i32
    return %c0_i32, %arg1 : i32, i32
  }
  func.func @transform_2(%arg0: i32, %arg1: i32) -> (i32, i32) {
    %c0_i32 = arith.constant 0 : i32
    %c0_i32_0 = arith.constant 0 : i32
    return %c0_i32, %arg1 : i32, i32
  }
  func.func @transform_3(%arg0: i32, %arg1: i32) -> (i32, i32) {
    %c0_i32 = arith.constant 0 : i32
    %c0_i32_0 = arith.constant 0 : i32
    return %arg1, %c0_i32 : i32, i32
  }
  func.func @transform_4(%arg0: i32, %arg1: i32) -> (i32, i32) {
    %c0_i32 = arith.constant 0 : i32
    %c0_i32_0 = arith.constant 0 : i32
    %c0_i32_1 = arith.constant 0 : i32
    return %c0_i32, %c0_i32_0 : i32, i32
  }
  func.func @transform_5(%arg0: i32, %arg1: i32) -> (i32, i32) {
    %c0_i32 = arith.constant 0 : i32
    %c0_i32_0 = arith.constant 0 : i32
    return %arg0, %c0_i32 : i32, i32
  }
}

</mosaic_0001>

<llo_original>
// kernel: tpu_custom_call.1
$region0: #{tpu_custom_call.1}
  #allocation0 [shape = 'u32[]', space=smem, size = 0x4, offset = 0x4, fixed_abs, tag = 'smem constant byte address 0x4 - core index']
  #allocation1 [shape = 'u32[144,128]{1,0:T(1,128)}', space=vmem, size = 0x12000, scoped, tag = 'internal scratch']
  #allocation2 [shape = 'f32[8,256]{1,0:T(8,128)}', space=vmem, size = 0x2000, scoped, tag = 'scratch operand']
  %s0 = inlined_call_operand.hbm [shape: f32[16,256], index: 0, kind: input, shape index: {}]
  %s1 = inlined_call_operand.hbm [shape: bf16[256,256], index: 1, kind: input, shape index: {}]
  %s2 = inlined_call_operand.vmem [shape: f32[1,256], index: 2, kind: input, shape index: {}]
  %s3 = inlined_call_operand.hbm [shape: bf16[256,256], index: 3, kind: input, shape index: {}]
  %s4 = inlined_call_operand.vmem [shape: f32[1,256], index: 4, kind: input, shape index: {}]
  %s5 = inlined_call_operand.hbm [shape: f32[16,256], index: 5, kind: output, shape index: {}]
  %s6 = sld [smem:[#allocation0]]
  $region73: #{tpu_custom_call.1} parent=0
    _
  %s8 = ssub.s32 1, %s6
  %s9 = scalar_select 0, %s8, %s6
  $region1: #{tpu_custom_call.1} parent=0
    #allocation3 [shape = 'u8[16384]{0}', space=vmem, size = 0x4000, scoped, tag = 'input window, operand 0']
    #allocation4 [shape = 's32[2]{0}', space=sflag, size = 0x8, scoped, tag = 'scoped memory for tpu_custom_call.1']
    #allocation5 [shape = 's32[2]{0}', space=sflag, size = 0x8, scoped, tag = 'scoped memory for tpu_custom_call.1']
    #allocation6 [shape = 'u8[131072]{0}', space=vmem, size = 0x20000, scoped, tag = 'input window, operand 1, single buffered']
    #allocation7 [shape = 's32[1]{0}', space=sflag, size = 0x4, scoped, tag = 'scoped memory for tpu_custom_call.1']
    #allocation8 [shape = 'u8[131072]{0}', space=vmem, size = 0x20000, scoped, tag = 'input window, operand 3, single buffered']
    #allocation9 [shape = 'u8[16384]{0}', space=vmem, size = 0x4000, scoped, tag = 'output window, operand 0']
    %10 = vsyncpa [#allocation4], 0
    %s11 = scalar_lea.sflag [#allocation4], 1
    %12 = vsyncpa %s11, 0
    %13 = vsyncpa [#allocation7], 0
    %14 = vsyncpa [#allocation5], 0
    %s15 = scalar_lea.sflag [#allocation5], 1
    %16 = vsyncpa %s15, 0
    loop: start=0, step=1, limit=4
    $region2: #{tpu_custom_call.1} parent=1 // loop_pre_header
      _
    $region3: #{tpu_custom_call.1} parent=1 // loop_header
      %s18 = sphi 0, %s22
      %p19 = scmp.ge.s32.totalorder %s18, 4
      %s25 = sphi 0, %s37
      %s26 = sphi 0, %s33
      %s27 = sphi 0, %s25
      %s28 = sphi 0, %s26
      %s29 = sphi 0, %s27
      %s30 = sphi 0, %s28
      %s40 = sphi 0, %s42
      %s43 = sphi 0, %s40
      %s44 = sphi 0, %s43
      %s60 = sphi 0, %s44
      %s66 = sphi 0, %s68
      %s69 = sphi 0, %s66
      %s70 = sphi 0, %s69
      %s86 = sphi 0, %s70
      %s92 = sphi 0, %s94
      %s95 = sphi 0, %s92
      %s96 = sphi 0, %s95
      %s112 = sphi 0, %s96
      %s118 = sphi 0, %s120
      %s121 = sphi 0, %s118
      %s122 = sphi 0, %s121
      %s138 = sphi 0, %s122
      %s142 = sphi 0, %s142
      %s144 = sphi 0, %s142
      %s145 = sphi 0, %s144
      %s159 = sphi 0, %s145
      %s165 = sphi 0, %s167
      %s168 = sphi 0, %s165
      %s169 = sphi 0, %s168
      %s185 = sphi 0, %s169
    $region4: #{tpu_custom_call.1} parent=1 // loop_header_branch
      %21 = sbr.rel (%p19) target = $region8
    $region5: #{tpu_custom_call.1} parent=1 // loop_body
      %s23 = ssub.s32 %s18, 1
      %s24 = ssub.s32 %s18, 2
      %s31 = sadd.s32 1, %s26
      %p32 = scmp.ge.s32.totalorder %s31, 1
      %s33 = scalar_select %p32, 0, %s31
      %s34 = sadd.s32 1, %s25
      %s35 = scalar_select %p32, %s34, %s25
      %p36 = scmp.ge.s32.totalorder %s35, 2
      %s37 = scalar_select %p36, 0, %s35
      %s38 = ssub.s32 %s25, %s37
      %p39 = scmp.eq.s32.totalorder %s38, 0
      %s41 = sadd.s32 %s40, 1
      %s42 = scalar_select %p39, %s40, %s41
      %p45 = pneg %p39
      %p46 = scmp.eq.s32.totalorder %s18, 1
      %p47 = por %p45, %p46
      %p48 = scmp.ne.s32.totalorder %s40, %s43
      %p49 = scmp.eq.s32.totalorder %s18, 0
      %p50 = por %p48, %p49
      %p51 = scmp.ne.s32.totalorder %s40, %s43
      %p52 = scmp.eq.s32.totalorder %s23, 1
      %p53 = por %p51, %p52
      %p54 = scmp.ne.s32.totalorder %s43, %s44
      %p55 = scmp.eq.s32.totalorder %s23, 0
      %p56 = por %p54, %p55
      %p57 = scmp.ne.s32.totalorder %s43, %s44
      %p58 = scmp.eq.s32.totalorder %s24, 1
      %p59 = por %p57, %p58
      %p61 = scmp.ne.s32.totalorder %s44, %s60
      %p62 = scmp.eq.s32.totalorder %s24, 0
      %p63 = por %p61, %p62
      %s64 = ssub.s32 %s26, %s33
      %p65 = scmp.eq.s32.totalorder %s64, 0
      %s67 = sadd.s32 %s66, 1
      %s68 = scalar_select %p65, %s66, %s67
      %p71 = pneg %p65
      %p72 = scmp.eq.s32.totalorder %s18, 1
      %p73 = por %p71, %p72
      %p74 = scmp.ne.s32.totalorder %s66, %s69
      %p75 = scmp.eq.s32.totalorder %s18, 0
      %p76 = por %p74, %p75
      %p77 = scmp.ne.s32.totalorder %s66, %s69
      %p78 = scmp.eq.s32.totalorder %s23, 1
      %p79 = por %p77, %p78
      %p80 = scmp.ne.s32.totalorder %s69, %s70
      %p81 = scmp.eq.s32.totalorder %s23, 0
      %p82 = por %p80, %p81
      %p83 = scmp.ne.s32.totalorder %s69, %s70
      %p84 = scmp.eq.s32.totalorder %s24, 1
      %p85 = por %p83, %p84
      %p87 = scmp.ne.s32.totalorder %s70, %s86
      %p88 = scmp.eq.s32.totalorder %s24, 0
      %p89 = por %p87, %p88
      %s90 = ssub.s32 %s26, %s33
      %p91 = scmp.eq.s32.totalorder %s90, 0
      %s93 = sadd.s32 %s92, 1
      %s94 = scalar_select %p91, %s92, %s93
      %p97 = pneg %p91
      %p98 = scmp.eq.s32.totalorder %s18, 1
      %p99 = por %p97, %p98
      %p100 = scmp.ne.s32.totalorder %s92, %s95
      %p101 = scmp.eq.s32.totalorder %s18, 0
      %p102 = por %p100, %p101
      %p103 = scmp.ne.s32.totalorder %s92, %s95
      %p104 = scmp.eq.s32.totalorder %s23, 1
      %p105 = por %p103, %p104
      %p106 = scmp.ne.s32.totalorder %s95, %s96
      %p107 = scmp.eq.s32.totalorder %s23, 0
      %p108 = por %p106, %p107
      %p109 = scmp.ne.s32.totalorder %s95, %s96
      %p110 = scmp.eq.s32.totalorder %s24, 1
      %p111 = por %p109, %p110
      %p113 = scmp.ne.s32.totalorder %s96, %s112
      %p114 = scmp.eq.s32.totalorder %s24, 0
      %p115 = por %p113, %p114
      %s116 = ssub.s32 %s26, %s33
      %p117 = scmp.eq.s32.totalorder %s116, 0
      %s119 = sadd.s32 %s118, 1
      %s120 = scalar_select %p117, %s118, %s119
      %p123 = pneg %p117
      %p124 = scmp.eq.s32.totalorder %s18, 1
      %p125 = por %p123, %p124
      %p126 = scmp.ne.s32.totalorder %s118, %s121
      %p127 = scmp.eq.s32.totalorder %s18, 0
      %p128 = por %p126, %p127
      %p129 = scmp.ne.s32.totalorder %s118, %s121
      %p130 = scmp.eq.s32.totalorder %s23, 1
      %p131 = por %p129, %p130
      %p132 = scmp.ne.s32.totalorder %s121, %s122
      %p133 = scmp.eq.s32.totalorder %s23, 0
      %p134 = por %p132, %p133
      %p135 = scmp.ne.s32.totalorder %s121, %s122
      %p136 = scmp.eq.s32.totalorder %s24, 1
      %p137 = por %p135, %p136
      %p139 = scmp.ne.s32.totalorder %s122, %s138
      %p140 = scmp.eq.s32.totalorder %s24, 0
      %p141 = por %p139, %p140
      %s143 = sadd.s32 %s142, 1
      %p146 = scmp.eq.s32.totalorder %s18, 1
      %p147 = scmp.ne.s32.totalorder %s142, %s144
      %p148 = scmp.eq.s32.totalorder %s18, 0
      %p149 = por %p147, %p148
      %p150 = scmp.ne.s32.totalorder %s142, %s144
      %p151 = scmp.eq.s32.totalorder %s23, 1
      %p152 = por %p150, %p151
      %p153 = scmp.ne.s32.totalorder %s144, %s145
      %p154 = scmp.eq.s32.totalorder %s23, 0
      %p155 = por %p153, %p154
      %p156 = scmp.ne.s32.totalorder %s144, %s145
      %p157 = scmp.eq.s32.totalorder %s24, 1
      %p158 = por %p156, %p157
      %p160 = scmp.ne.s32.totalorder %s145, %s159
      %p161 = scmp.eq.s32.totalorder %s24, 0
      %p162 = por %p160, %p161
      %s163 = ssub.s32 %s25, %s37
      %p164 = scmp.eq.s32.totalorder %s163, 0
      %s166 = sadd.s32 %s165, 1
      %s167 = scalar_select %p164, %s165, %s166
      %p170 = pneg %p164
      %p171 = scmp.eq.s32.totalorder %s18, 1
      %p172 = por %p170, %p171
      %p173 = scmp.ne.s32.totalorder %s165, %s168
      %p174 = scmp.eq.s32.totalorder %s18, 0
      %p175 = por %p173, %p174
      %p176 = scmp.ne.s32.totalorder %s165, %s168
      %p177 = scmp.eq.s32.totalorder %s23, 1
      %p178 = por %p176, %p177
      %p179 = scmp.ne.s32.totalorder %s168, %s169
      %p180 = scmp.eq.s32.totalorder %s23, 0
      %p181 = por %p179, %p180
      %p182 = scmp.ne.s32.totalorder %s168, %s169
      %p183 = scmp.eq.s32.totalorder %s24, 1
      %p184 = por %p182, %p183
      %p186 = scmp.ne.s32.totalorder %s169, %s185
      %p187 = scmp.eq.s32.totalorder %s24, 0
      %p188 = por %p186, %p187
      %p189 = scmp.le.s32.totalorder 1, %s18
      %p190 = scmp.lt.s32.totalorder %s18, 3
      %p191 = pnand %p189, %p190
      %p192 = pneg %p191
      // Predicated region
      $region9: #{tpu_custom_call.1} parent=5 // pred_check
        _
      $region10: #{tpu_custom_call.1} parent=5 // pred_check_branch
        %194 = sbr.rel (%p191) target = $region12
      $region11: #{tpu_custom_call.1} parent=5 // pred_region
        %s195 = ssub.s32 %s18, 1
        // Predicated region
        $region13: #{tpu_custom_call.1} parent=11 // pred_check
          %p196 = pneg %p82
        $region14: #{tpu_custom_call.1} parent=11 // pred_check_branch
          %198 = sbr.rel (%p196) target = $region16
        $region15: #{tpu_custom_call.1} parent=11 // pred_region
          %s199 = smul.u32 2, %s28
          %s201 = ssub.s32 4096, 4096
          %202 = vsyncadd [#allocation7], %s201
          %s203 = smul.addr %s199, 64
          %s204 = scalar_lea.hbm %s1, %s203
          %s205 = sshll.u32 [#allocation6], 4
          %s206 = int_to_ptr.vmem [resolvable:$true] %s205
          %211 = dma.hbm_to_vmem [thread:$0]  %s204, 4096, %s206, [#allocation7], 128, 128, 8
        $region16: #{tpu_custom_call.1} parent=11 // pred_fallthru
          _
        // Predicated region
        $region17: #{tpu_custom_call.1} parent=11 // pred_check
          %p212 = pneg %p108
        $region18: #{tpu_custom_call.1} parent=11 // pred_check_branch
          %214 = sbr.rel (%p212) target = $region20
        $region19: #{tpu_custom_call.1} parent=11 // pred_region
          %s215 = smul.u32 2, %s28
          %p216 = scmp.lt.s32.totalorder %s215, 1
          %s217 = scalar_select %p216, %s215, 1
          %s218 = scalar_lea.vmem %s2, %s217
          %s219 = smul.u32 2, %s28
        $region20: #{tpu_custom_call.1} parent=11 // pred_fallthru
          _
        // Predicated region
        $region21: #{tpu_custom_call.1} parent=11 // pred_check
          %p220 = pneg %p134
        $region22: #{tpu_custom_call.1} parent=11 // pred_check_branch
          %222 = sbr.rel (%p220) target = $region24
        $region23: #{tpu_custom_call.1} parent=11 // pred_region
          %s223 = smul.u32 32, %s28
          %s225 = ssub.s32 4096, 4096
          %226 = vsyncadd [#allocation7], %s225
          %s227 = smul.addr %s223, 2
          %s228 = smul.addr %s227, 64
          %s229 = scalar_lea.hbm %s3, %s228
          %s230 = sshll.u32 [#allocation8], 4
          %s231 = int_to_ptr.vmem [resolvable:$true] %s230
          %236 = dma.hbm_to_vmem [thread:$0]  %s229, 4096, %s231, [#allocation7], 128, 128, 8
        $region24: #{tpu_custom_call.1} parent=11 // pred_fallthru
          _
        // Predicated region
        $region25: #{tpu_custom_call.1} parent=11 // pred_check
          %p237 = pneg %p155
        $region26: #{tpu_custom_call.1} parent=11 // pred_check_branch
          %239 = sbr.rel (%p237) target = $region28
        $region27: #{tpu_custom_call.1} parent=11 // pred_region
          _
        $region28: #{tpu_custom_call.1} parent=11 // pred_fallthru
          _
      $region12: #{tpu_custom_call.1} parent=5 // pred_fallthru
        _
      %p240 = scmp.lt.s32.totalorder %s18, 2
      // Predicated region
      $region29: #{tpu_custom_call.1} parent=5 // pred_check
        %p241 = pneg %p240
      $region30: #{tpu_custom_call.1} parent=5 // pred_check_branch
        %243 = sbr.rel (%p241) target = $region32
      $region31: #{tpu_custom_call.1} parent=5 // pred_region
        // Predicated region
        $region33: #{tpu_custom_call.1} parent=31 // pred_check
          %p244 = pneg %p50
        $region34: #{tpu_custom_call.1} parent=31 // pred_check_branch
          %246 = sbr.rel (%p244) target = $region36
        $region35: #{tpu_custom_call.1} parent=31 // pred_region
          %s247 = sand.u32 %s40, 1
          %s248 = scalar_lea.sflag [#allocation4], %s247
          %s249 = sand.u32 %s40, 1
          %s250 = smul.addr %s249, 16
          %s251 = scalar_lea.vmem [#allocation3], %s250
          %s253 = ssub.s32 256, 256
          %254 = vsyncadd %s248, %s253
          %s255 = smul.addr %s25, 2
          %s256 = smul.addr %s255, 128
          %s257 = scalar_lea.hbm %s0, %s256
          %s259 = sshll.u32 %s251, 4
          %s260 = int_to_ptr.vmem [resolvable:$true] %s259
          %262 = dma.hbm_to_vmem [thread:$0]  %s257, 256, %s260, %s248
        $region36: #{tpu_custom_call.1} parent=31 // pred_fallthru
          _
      $region32: #{tpu_custom_call.1} parent=5 // pred_fallthru
        _
      %p263 = scmp.le.s32.totalorder 1, %s18
      %p264 = scmp.lt.s32.totalorder %s18, 3
      %p265 = pnand %p263, %p264
      %p266 = pneg %p265
      // Predicated region
      $region37: #{tpu_custom_call.1} parent=5 // pred_check
        _
      $region38: #{tpu_custom_call.1} parent=5 // pred_check_branch
        %268 = sbr.rel (%p265) target = $region40
      $region39: #{tpu_custom_call.1} parent=5 // pred_region
        %s269 = ssub.s32 %s18, 1
        %s270 = sand.u32 %s43, 1
        %s271 = scalar_lea.sflag [#allocation4], %s270
        %s272 = sand.u32 %s43, 1
        %s273 = smul.addr %s272, 16
        %s274 = scalar_lea.vmem [#allocation3], %s273
        // Predicated region
        $region41: #{tpu_custom_call.1} parent=39 // pred_check
          %p275 = pneg %p56
        $region42: #{tpu_custom_call.1} parent=39 // pred_check_branch
          %277 = sbr.rel (%p275) target = $region44
        $region43: #{tpu_custom_call.1} parent=39 // pred_region
          %278 = dma.done %s271, 256
        $region44: #{tpu_custom_call.1} parent=39 // pred_fallthru
          _
        // Predicated region
        $region45: #{tpu_custom_call.1} parent=39 // pred_check
          %p279 = pneg %p82
        $region46: #{tpu_custom_call.1} parent=39 // pred_check_branch
          %281 = sbr.rel (%p279) target = $region48
        $region47: #{tpu_custom_call.1} parent=39 // pred_region
          %282 = dma.done [#allocation7], 4096
        $region48: #{tpu_custom_call.1} parent=39 // pred_fallthru
          _
        // Predicated region
        $region49: #{tpu_custom_call.1} parent=39 // pred_check
          %p283 = pneg %p134
        $region50: #{tpu_custom_call.1} parent=39 // pred_check_branch
          %285 = sbr.rel (%p283) target = $region52
        $region51: #{tpu_custom_call.1} parent=39 // pred_region
          %286 = dma.done [#allocation7], 4096
        $region52: #{tpu_custom_call.1} parent=39 // pred_fallthru
          _
        %s287 = sand.u32 %s43, 1
        %s288 = scalar_lea.sflag [#allocation4], %s287
        %s289 = sand.u32 %s43, 1
        %s290 = smul.addr %s289, 16
        %s291 = scalar_lea.vmem [#allocation3], %s290
        %p292 = pneg %p56
        %p293 = pneg %p53
        %p294 = pneg %p82
        %p295 = pneg %p79
        %s296 = smul.u32 2, %s28
        %p297 = scmp.lt.s32.totalorder %s296, 1
        %s298 = scalar_select %p297, %s296, 1
        %s299 = scalar_lea.vmem %s2, %s298
        %p300 = pneg %p108
        %p301 = pneg %p105
        %p302 = pneg %p134
        %p303 = pneg %p131
        %p304 = pneg %p155
        %p305 = pneg %p152
        %p306 = pneg %p181
        %p307 = pneg %p178
        %s308 = sand.u32 %s168, 1
        %s309 = scalar_lea.sflag [#allocation5], %s308
        %s310 = sand.u32 %s168, 1
        %s311 = smul.addr %s310, 16
        %s312 = scalar_lea.vmem [#allocation9], %s311
        %s313 = smul.u32 2, %s28
        %s314 = smul.u32 2, %s28
        %p315 = scmp.lt.s32.totalorder %s314, 1
        %s316 = scalar_select %p315, %s314, 1
        %s317 = scalar_lea.vmem %s2, %s316
        %s318 = smul.u32 2, %s28
        %s319 = smul.u32 32, %s28
        %p320 = scmp.eq.s32.totalorder %s28, 0
        // Predicated region
        $region53: #{tpu_custom_call.1} parent=39 // pred_check
          %p321 = pneg %p320
        $region54: #{tpu_custom_call.1} parent=39 // pred_check_branch
          %323 = sbr.rel (%p321) target = $region56
        $region55: #{tpu_custom_call.1} parent=39 // pred_region
          %324 = vst [vmem:[#allocation2] sm:$0xff] 0.0
          %325 = vst [vmem:[#allocation2 + $0x8] sm:$0xff] 0.0
        $region56: #{tpu_custom_call.1} parent=39 // pred_fallthru
          _
        %v326 = vld [vmem:[%s274] sm:$0xff]
        %v327 = vld [vmem:[%s274 + $0x8] sm:$0xff]
        %v328 = vpack.c.bf16 %v326, %v326
        %v329 = vpack.c.bf16 %v327, %v327
        %v330 = vld [vmem:[#allocation6] sm:$0xff]
        %v331 = vld [vmem:[#allocation6 + $0x8] sm:$0xff]
        %v332 = vld [vmem:[#allocation6 + $0x10] sm:$0xff]
        %v333 = vld [vmem:[#allocation6 + $0x18] sm:$0xff]
        %v334 = vld [vmem:[#allocation6 + $0x20] sm:$0xff]
        %v335 = vld [vmem:[#allocation6 + $0x28] sm:$0xff]
        %v336 = vld [vmem:[#allocation6 + $0x30] sm:$0xff]
        %v337 = vld [vmem:[#allocation6 + $0x38] sm:$0xff]
        %v338 = vld [vmem:[#allocation6 + $0x40] sm:$0xff]
        %v339 = vld [vmem:[#allocation6 + $0x48] sm:$0xff]
        %v340 = vld [vmem:[#allocation6 + $0x50] sm:$0xff]
        %v341 = vld [vmem:[#allocation6 + $0x58] sm:$0xff]
        %v342 = vld [vmem:[#allocation6 + $0x60] sm:$0xff]
        %v343 = vld [vmem:[#allocation6 + $0x68] sm:$0xff]
        %v344 = vld [vmem:[#allocation6 + $0x70] sm:$0xff]
        %v345 = vld [vmem:[#allocation6 + $0x78] sm:$0xff]
        %v346 = vld [vmem:[#allocation6 + $0x80] sm:$0xff]
        %v347 = vld [vmem:[#allocation6 + $0x88] sm:$0xff]
        %v348 = vld [vmem:[#allocation6 + $0x90] sm:$0xff]
        %v349 = vld [vmem:[#allocation6 + $0x98] sm:$0xff]
        %v350 = vld [vmem:[#allocation6 + $0xa0] sm:$0xff]
        %v351 = vld [vmem:[#allocation6 + $0xa8] sm:$0xff]
        %v352 = vld [vmem:[#allocation6 + $0xb0] sm:$0xff]
        %v353 = vld [vmem:[#allocation6 + $0xb8] sm:$0xff]
        %v354 = vld [vmem:[#allocation6 + $0xc0] sm:$0xff]
        %v355 = vld [vmem:[#allocation6 + $0xc8] sm:$0xff]
        %v356 = vld [vmem:[#allocation6 + $0xd0] sm:$0xff]
        %v357 = vld [vmem:[#allocation6 + $0xd8] sm:$0xff]
        %v358 = vld [vmem:[#allocation6 + $0xe0] sm:$0xff]
        %v359 = vld [vmem:[#allocation6 + $0xe8] sm:$0xff]
        %v360 = vld [vmem:[#allocation6 + $0xf0] sm:$0xff]
        %v361 = vld [vmem:[#allocation6 + $0xf8] sm:$0xff]
        %v362 = vld [vmem:[%s317] sm:$0x3]
        %v364 = vlaneseq
        %v365 = vshrl.u32 %v364, 7
        %v366 = vsub.s32 0, %v365
        %v367 = vrot.slane %v362, %v366
        %v368 = vlaneseq
        %v369 = vshrl.u32 %v368, 7
        %v370 = vsub.s32 1, %v369
        %v371 = vrot.slane %v362, %v370
        %v406 = vunpack.c.l.b16 %v330
        %v407 = vunpack.c.h.b16 %v330
        %v408 = vunpack.c.l.b16 %v331
        %v409 = vunpack.c.h.b16 %v331
        %v410 = vunpack.c.l.b16 %v332
        %v411 = vunpack.c.h.b16 %v332
        %v412 = vunpack.c.l.b16 %v333
        %v413 = vunpack.c.h.b16 %v333
        %v414 = vunpack.c.l.b16 %v334
        %v415 = vunpack.c.h.b16 %v334
        %v416 = vunpack.c.l.b16 %v335
        %v417 = vunpack.c.h.b16 %v335
        %v418 = vunpack.c.l.b16 %v336
        %v419 = vunpack.c.h.b16 %v336
        %v420 = vunpack.c.l.b16 %v337
        %v421 = vunpack.c.h.b16 %v337
        %v422 = vunpack.c.l.b16 %v338
        %v423 = vunpack.c.h.b16 %v338
        %v424 = vunpack.c.l.b16 %v339
        %v425 = vunpack.c.h.b16 %v339
        %v426 = vunpack.c.l.b16 %v340
        %v427 = vunpack.c.h.b16 %v340
        %v428 = vunpack.c.l.b16 %v341
        %v429 = vunpack.c.h.b16 %v341
        %v430 = vunpack.c.l.b16 %v342
        %v431 = vunpack.c.h.b16 %v342
        %v432 = vunpack.c.l.b16 %v343
        %v433 = vunpack.c.h.b16 %v343
        %v434 = vunpack.c.l.b16 %v344
        %v435 = vunpack.c.h.b16 %v344
        %v436 = vunpack.c.l.b16 %v345
        %v437 = vunpack.c.h.b16 %v345
        %v438 = vunpack.c.l.b16 %v346
        %v439 = vunpack.c.h.b16 %v346
        %v440 = vunpack.c.l.b16 %v347
        %v441 = vunpack.c.h.b16 %v347
        %v442 = vunpack.c.l.b16 %v348
        %v443 = vunpack.c.h.b16 %v348
        %v444 = vunpack.c.l.b16 %v349
        %v445 = vunpack.c.h.b16 %v349
        %v446 = vunpack.c.l.b16 %v350
        %v447 = vunpack.c.h.b16 %v350
        %v448 = vunpack.c.l.b16 %v351
        %v449 = vunpack.c.h.b16 %v351
        %v450 = vunpack.c.l.b16 %v352
        %v451 = vunpack.c.h.b16 %v352
        %v452 = vunpack.c.l.b16 %v353
        %v453 = vunpack.c.h.b16 %v353
        %v454 = vunpack.c.l.b16 %v354
        %v455 = vunpack.c.h.b16 %v354
        %v456 = vunpack.c.l.b16 %v355
        %v457 = vunpack.c.h.b16 %v355
        %v458 = vunpack.c.l.b16 %v356
        %v459 = vunpack.c.h.b16 %v356
        %v460 = vunpack.c.l.b16 %v357
        %v461 = vunpack.c.h.b16 %v357
        %v462 = vunpack.c.l.b16 %v358
        %v463 = vunpack.c.h.b16 %v358
        %v464 = vunpack.c.l.b16 %v359
        %v465 = vunpack.c.h.b16 %v359
        %v466 = vunpack.c.l.b16 %v360
        %v467 = vunpack.c.h.b16 %v360
        %v468 = vunpack.c.l.b16 %v361
        %v469 = vunpack.c.h.b16 %v361
        %v470 = vpack.c.b16 %v408, %v406
        %v471 = vpack.c.b16 %v409, %v407
        %v472 = vpack.c.b16 %v412, %v410
        %v473 = vpack.c.b16 %v413, %v411
        %v474 = vpack.c.b16 %v416, %v414
        %v475 = vpack.c.b16 %v417, %v415
        %v476 = vpack.c.b16 %v420, %v418
        %v477 = vpack.c.b16 %v421, %v419
        %v478 = vpack.c.b16 %v424, %v422
        %v479 = vpack.c.b16 %v425, %v423
        %v480 = vpack.c.b16 %v428, %v426
        %v481 = vpack.c.b16 %v429, %v427
        %v482 = vpack.c.b16 %v432, %v430
        %v483 = vpack.c.b16 %v433, %v431
        %v484 = vpack.c.b16 %v436, %v434
        %v485 = vpack.c.b16 %v437, %v435
        %v486 = vpack.c.b16 %v440, %v438
        %v487 = vpack.c.b16 %v441, %v439
        %v488 = vpack.c.b16 %v444, %v442
        %v489 = vpack.c.b16 %v445, %v443
        %v490 = vpack.c.b16 %v448, %v446
        %v491 = vpack.c.b16 %v449, %v447
        %v492 = vpack.c.b16 %v452, %v450
        %v493 = vpack.c.b16 %v453, %v451
        %v494 = vpack.c.b16 %v456, %v454
        %v495 = vpack.c.b16 %v457, %v455
        %v496 = vpack.c.b16 %v460, %v458
        %v497 = vpack.c.b16 %v461, %v459
        %v498 = vpack.c.b16 %v464, %v462
        %v499 = vpack.c.b16 %v465, %v463
        %v500 = vpack.c.b16 %v468, %v466
        %v501 = vpack.c.b16 %v469, %v467
        %534 = vmatprep.subr.bf16.mxu0 %v471
        %535 = vmatpush1.bf16.msra.mxu0 %v470
        %536 = vmatprep.subr.bf16.mxu0 %v473
        %537 = vmatpush1.bf16.msra.mxu0 %v472
        %538 = vmatprep.subr.bf16.mxu0 %v475
        %539 = vmatpush1.bf16.msra.mxu0 %v474
        %540 = vmatprep.subr.bf16.mxu0 %v477
        %541 = vmatpush1.bf16.msra.mxu0 %v476
        %542 = vmatprep.subr.bf16.mxu0 %v479
        %543 = vmatpush1.bf16.msra.mxu0 %v478
        %544 = vmatprep.subr.bf16.mxu0 %v481
        %545 = vmatpush1.bf16.msra.mxu0 %v480
        %546 = vmatprep.subr.bf16.mxu0 %v483
        %547 = vmatpush1.bf16.msra.mxu0 %v482
        %548 = vmatprep.subr.bf16.mxu0 %v485
        %549 = vmatpush1.bf16.msra.mxu0 %v484
        %550 = vmatprep.subr.bf16.mxu0 %v487
        %551 = vmatpush1.bf16.msra.mxu0 %v486
        %552 = vmatprep.subr.bf16.mxu0 %v489
        %553 = vmatpush1.bf16.msra.mxu0 %v488
        %554 = vmatprep.subr.bf16.mxu0 %v491
        %555 = vmatpush1.bf16.msra.mxu0 %v490
        %556 = vmatprep.subr.bf16.mxu0 %v493
        %557 = vmatpush1.bf16.msra.mxu0 %v492
        %558 = vmatprep.subr.bf16.mxu0 %v495
        %559 = vmatpush1.bf16.msra.mxu0 %v494
        %560 = vmatprep.subr.bf16.mxu0 %v497
        %561 = vmatpush1.bf16.msra.mxu0 %v496
        %562 = vmatprep.subr.bf16.mxu0 %v499
        %563 = vmatpush1.bf16.msra.mxu0 %v498
        %564 = vmatprep.subr.bf16.mxu0 %v501
        %565 = vmatpush1.bf16.msra.mxu0 %v500
        %566 = vmatprep.mubr.bf16.mxu0 %v329
        %567 = vmatmul.mubr.bf16.gmra.mrb[0].mxu0 %v328
        %v568 = vpop.f32.mrb[0].mxu0
        %v569 = vadd.f32 %v367, %v568
        %v570 = vpop.f32.mrb[0].mxu0
        %v571 = vadd.f32 %v371, %v570
        %v572 = vpop.f32.mrb[0].mxu0
        %v573 = vpop.f32.mrb[0].mxu0
        %574 = vdwg.mxu0
        %v575 = vmax.f32 %v569, 0.0
        %v576 = vmax.f32 %v571, 0.0
        %v577 = vld [vmem:[#allocation2] sm:$0xff]
        %v578 = vld [vmem:[#allocation2 + $0x8] sm:$0xff]
        %v579 = vpack.c.bf16 %v575, %v575
        %v580 = vpack.c.bf16 %v576, %v576
        %v581 = vld [vmem:[#allocation8] sm:$0xff]
        %v582 = vld [vmem:[#allocation8 + $0x8] sm:$0xff]
        %v583 = vld [vmem:[#allocation8 + $0x10] sm:$0xff]
        %v584 = vld [vmem:[#allocation8 + $0x18] sm:$0xff]
        %v585 = vld [vmem:[#allocation8 + $0x20] sm:$0xff]
        %v586 = vld [vmem:[#allocation8 + $0x28] sm:$0xff]
        %v587 = vld [vmem:[#allocation8 + $0x30] sm:$0xff]
        %v588 = vld [vmem:[#allocation8 + $0x38] sm:$0xff]
        %v589 = vld [vmem:[#allocation8 + $0x40] sm:$0xff]
        %v590 = vld [vmem:[#allocation8 + $0x48] sm:$0xff]
        %v591 = vld [vmem:[#allocation8 + $0x50] sm:$0xff]
        %v592 = vld [vmem:[#allocation8 + $0x58] sm:$0xff]
        %v593 = vld [vmem:[#allocation8 + $0x60] sm:$0xff]
        %v594 = vld [vmem:[#allocation8 + $0x68] sm:$0xff]
        %v595 = vld [vmem:[#allocation8 + $0x70] sm:$0xff]
        %v596 = vld [vmem:[#allocation8 + $0x78] sm:$0xff]
        %v597 = vld [vmem:[#allocation8 + $0x80] sm:$0xff]
        %v598 = vld [vmem:[#allocation8 + $0x88] sm:$0xff]
        %v599 = vld [vmem:[#allocation8 + $0x90] sm:$0xff]
        %v600 = vld [vmem:[#allocation8 + $0x98] sm:$0xff]
        %v601 = vld [vmem:[#allocation8 + $0xa0] sm:$0xff]
        %v602 = vld [vmem:[#allocation8 + $0xa8] sm:$0xff]
        %v603 = vld [vmem:[#allocation8 + $0xb0] sm:$0xff]
        %v604 = vld [vmem:[#allocation8 + $0xb8] sm:$0xff]
        %v605 = vld [vmem:[#allocation8 + $0xc0] sm:$0xff]
        %v606 = vld [vmem:[#allocation8 + $0xc8] sm:$0xff]
        %v607 = vld [vmem:[#allocation8 + $0xd0] sm:$0xff]
        %v608 = vld [vmem:[#allocation8 + $0xd8] sm:$0xff]
        %v609 = vld [vmem:[#allocation8 + $0xe0] sm:$0xff]
        %v610 = vld [vmem:[#allocation8 + $0xe8] sm:$0xff]
        %v611 = vld [vmem:[#allocation8 + $0xf0] sm:$0xff]
        %v612 = vld [vmem:[#allocation8 + $0xf8] sm:$0xff]
        %v645 = vunpack.c.l.b16 %v581
        %v646 = vunpack.c.h.b16 %v581
        %v647 = vunpack.c.l.b16 %v582
        %v648 = vunpack.c.h.b16 %v582
        %v649 = vunpack.c.l.b16 %v583
        %v650 = vunpack.c.h.b16 %v583
        %v651 = vunpack.c.l.b16 %v584
        %v652 = vunpack.c.h.b16 %v584
        %v653 = vunpack.c.l.b16 %v585
        %v654 = vunpack.c.h.b16 %v585
        %v655 = vunpack.c.l.b16 %v586
        %v656 = vunpack.c.h.b16 %v586
        %v657 = vunpack.c.l.b16 %v587
        %v658 = vunpack.c.h.b16 %v587
        %v659 = vunpack.c.l.b16 %v588
        %v660 = vunpack.c.h.b16 %v588
        %v661 = vunpack.c.l.b16 %v589
        %v662 = vunpack.c.h.b16 %v589
        %v663 = vunpack.c.l.b16 %v590
        %v664 = vunpack.c.h.b16 %v590
        %v665 = vunpack.c.l.b16 %v591
        %v666 = vunpack.c.h.b16 %v591
        %v667 = vunpack.c.l.b16 %v592
        %v668 = vunpack.c.h.b16 %v592
        %v669 = vunpack.c.l.b16 %v593
        %v670 = vunpack.c.h.b16 %v593
        %v671 = vunpack.c.l.b16 %v594
        %v672 = vunpack.c.h.b16 %v594
        %v673 = vunpack.c.l.b16 %v595
        %v674 = vunpack.c.h.b16 %v595
        %v675 = vunpack.c.l.b16 %v596
        %v676 = vunpack.c.h.b16 %v596
        %v677 = vunpack.c.l.b16 %v597
        %v678 = vunpack.c.h.b16 %v597
        %v679 = vunpack.c.l.b16 %v598
        %v680 = vunpack.c.h.b16 %v598
        %v681 = vunpack.c.l.b16 %v599
        %v682 = vunpack.c.h.b16 %v599
        %v683 = vunpack.c.l.b16 %v600
        %v684 = vunpack.c.h.b16 %v600
        %v685 = vunpack.c.l.b16 %v601
        %v686 = vunpack.c.h.b16 %v601
        %v687 = vunpack.c.l.b16 %v602
        %v688 = vunpack.c.h.b16 %v602
        %v689 = vunpack.c.l.b16 %v603
        %v690 = vunpack.c.h.b16 %v603
        %v691 = vunpack.c.l.b16 %v604
        %v692 = vunpack.c.h.b16 %v604
        %v693 = vunpack.c.l.b16 %v605
        %v694 = vunpack.c.h.b16 %v605
        %v695 = vunpack.c.l.b16 %v606
        %v696 = vunpack.c.h.b16 %v606
        %v697 = vunpack.c.l.b16 %v607
        %v698 = vunpack.c.h.b16 %v607
        %v699 = vunpack.c.l.b16 %v608
        %v700 = vunpack.c.h.b16 %v608
        %v701 = vunpack.c.l.b16 %v609
        %v702 = vunpack.c.h.b16 %v609
        %v703 = vunpack.c.l.b16 %v610
        %v704 = vunpack.c.h.b16 %v610
        %v705 = vunpack.c.l.b16 %v611
        %v706 = vunpack.c.h.b16 %v611
        %v707 = vunpack.c.l.b16 %v612
        %v708 = vunpack.c.h.b16 %v612
        %v709 = vpack.c.b16 %v647, %v645
        %v710 = vpack.c.b16 %v648, %v646
        %v711 = vpack.c.b16 %v651, %v649
        %v712 = vpack.c.b16 %v652, %v650
        %v713 = vpack.c.b16 %v655, %v653
        %v714 = vpack.c.b16 %v656, %v654
        %v715 = vpack.c.b16 %v659, %v657
        %v716 = vpack.c.b16 %v660, %v658
        %v717 = vpack.c.b16 %v663, %v661
        %v718 = vpack.c.b16 %v664, %v662
        %v719 = vpack.c.b16 %v667, %v665
        %v720 = vpack.c.b16 %v668, %v666
        %v721 = vpack.c.b16 %v671, %v669
        %v722 = vpack.c.b16 %v672, %v670
        %v723 = vpack.c.b16 %v675, %v673
        %v724 = vpack.c.b16 %v676, %v674
        %v725 = vpack.c.b16 %v679, %v677
        %v726 = vpack.c.b16 %v680, %v678
        %v727 = vpack.c.b16 %v683, %v681
        %v728 = vpack.c.b16 %v684, %v682
        %v729 = vpack.c.b16 %v687, %v685
        %v730 = vpack.c.b16 %v688, %v686
        %v731 = vpack.c.b16 %v691, %v689
        %v732 = vpack.c.b16 %v692, %v690
        %v733 = vpack.c.b16 %v695, %v693
        %v734 = vpack.c.b16 %v696, %v694
        %v735 = vpack.c.b16 %v699, %v697
        %v736 = vpack.c.b16 %v700, %v698
        %v737 = vpack.c.b16 %v703, %v701
        %v738 = vpack.c.b16 %v704, %v702
        %v739 = vpack.c.b16 %v707, %v705
        %v740 = vpack.c.b16 %v708, %v706
        %773 = vmatprep.subr.bf16.mxu0 %v710
        %774 = vmatpush1.bf16.msra.mxu0 %v709
        %775 = vmatprep.subr.bf16.mxu0 %v712
        %776 = vmatpush1.bf16.msra.mxu0 %v711
        %777 = vmatprep.subr.bf16.mxu0 %v714
        %778 = vmatpush1.bf16.msra.mxu0 %v713
        %779 = vmatprep.subr.bf16.mxu0 %v716
        %780 = vmatpush1.bf16.msra.mxu0 %v715
        %781 = vmatprep.subr.bf16.mxu0 %v718
        %782 = vmatpush1.bf16.msra.mxu0 %v717
        %783 = vmatprep.subr.bf16.mxu0 %v720
        %784 = vmatpush1.bf16.msra.mxu0 %v719
        %785 = vmatprep.subr.bf16.mxu0 %v722
        %786 = vmatpush1.bf16.msra.mxu0 %v721
        %787 = vmatprep.subr.bf16.mxu0 %v724
        %788 = vmatpush1.bf16.msra.mxu0 %v723
        %789 = vmatprep.subr.bf16.mxu0 %v726
        %790 = vmatpush1.bf16.msra.mxu0 %v725
        %791 = vmatprep.subr.bf16.mxu0 %v728
        %792 = vmatpush1.bf16.msra.mxu0 %v727
        %793 = vmatprep.subr.bf16.mxu0 %v730
        %794 = vmatpush1.bf16.msra.mxu0 %v729
        %795 = vmatprep.subr.bf16.mxu0 %v732
        %796 = vmatpush1.bf16.msra.mxu0 %v731
        %797 = vmatprep.subr.bf16.mxu0 %v734
        %798 = vmatpush1.bf16.msra.mxu0 %v733
        %799 = vmatprep.subr.bf16.mxu0 %v736
        %800 = vmatpush1.bf16.msra.mxu0 %v735
        %801 = vmatprep.subr.bf16.mxu0 %v738
        %802 = vmatpush1.bf16.msra.mxu0 %v737
        %803 = vmatprep.subr.bf16.mxu0 %v740
        %804 = vmatpush1.bf16.msra.mxu0 %v739
        %805 = vmatprep.mubr.bf16.mxu0 %v580
        %806 = vmatmul.mubr.bf16.gmra.mrb[0].mxu0 %v579
        %v807 = vpop.f32.mrb[0].mxu0
        %v808 = vadd.f32 0.0, %v807
        %v809 = vpop.f32.mrb[0].mxu0
        %v810 = vadd.f32 0.0, %v809
        %v811 = vpop.f32.mrb[0].mxu0
        %v812 = vpop.f32.mrb[0].mxu0
        %813 = vdwg.mxu0
        %v814 = vadd.f32 %v577, %v808
        %v815 = vadd.f32 %v578, %v810
        %816 = vst [vmem:[#allocation2] sm:$0xff] %v814
        %817 = vst [vmem:[#allocation2 + $0x8] sm:$0xff] %v815
        // Predicated region
        $region57: #{tpu_custom_call.1} parent=39 // pred_check
          %p818 = pneg %p320
        $region58: #{tpu_custom_call.1} parent=39 // pred_check_branch
          %820 = sbr.rel (%p818) target = $region60
        $region59: #{tpu_custom_call.1} parent=39 // pred_region
          %v821 = vld [vmem:[#allocation2] sm:$0xff]
          %v822 = vld [vmem:[#allocation2 + $0x8] sm:$0xff]
          %v823 = vld [vmem:[%s4] sm:$0x3]
          %v825 = vlaneseq
          %v826 = vshrl.u32 %v825, 7
          %v827 = vsub.s32 0, %v826
          %v828 = vrot.slane %v823, %v827
          %v829 = vlaneseq
          %v830 = vshrl.u32 %v829, 7
          %v831 = vsub.s32 1, %v830
          %v832 = vrot.slane %v823, %v831
          %v835 = vadd.f32 %v821, %v828
          %v836 = vadd.f32 %v822, %v832
          %837 = vst [vmem:[%s312] sm:$0xff] %v835
          %838 = vst [vmem:[%s312 + $0x8] sm:$0xff] %v836
        $region60: #{tpu_custom_call.1} parent=39 // pred_fallthru
          _
        %s839 = sand.u32 %s168, 1
        %s840 = scalar_lea.sflag [#allocation5], %s839
        %s841 = sand.u32 %s168, 1
        %s842 = smul.addr %s841, 16
        %s843 = scalar_lea.vmem [#allocation9], %s842
        // Predicated region
        $region61: #{tpu_custom_call.1} parent=39 // pred_check
          %p844 = pneg %p178
        $region62: #{tpu_custom_call.1} parent=39 // pred_check_branch
          %846 = sbr.rel (%p844) target = $region64
        $region63: #{tpu_custom_call.1} parent=39 // pred_region
          %s848 = ssub.s32 256, 256
          %849 = vsyncadd %s840, %s848
          %s850 = smul.addr %s27, 2
          %s851 = smul.addr %s850, 128
          %s852 = scalar_lea.hbm %s5, %s851
          %s854 = sshll.u32 %s843, 4
          %s855 = int_to_ptr.vmem [resolvable:$true] %s854
          %857 = dma.vmem_to_hbm [thread:$0]  %s855, 256, %s852, %s840
        $region64: #{tpu_custom_call.1} parent=39 // pred_fallthru
          _
      $region40: #{tpu_custom_call.1} parent=5 // pred_fallthru
        _
      %p858 = scmp.le.s32.totalorder 2, %s18
      // Predicated region
      $region65: #{tpu_custom_call.1} parent=5 // pred_check
        %p859 = pneg %p858
      $region66: #{tpu_custom_call.1} parent=5 // pred_check_branch
        %861 = sbr.rel (%p859) target = $region68
      $region67: #{tpu_custom_call.1} parent=5 // pred_region
        %s862 = ssub.s32 %s18, 2
        // Predicated region
        $region69: #{tpu_custom_call.1} parent=67 // pred_check
          %p863 = pneg %p184
        $region70: #{tpu_custom_call.1} parent=67 // pred_check_branch
          %865 = sbr.rel (%p863) target = $region72
        $region71: #{tpu_custom_call.1} parent=67 // pred_region
          %s866 = sand.u32 %s169, 1
          %s867 = scalar_lea.sflag [#allocation5], %s866
          %s868 = sand.u32 %s169, 1
          %s869 = smul.addr %s868, 16
          %s870 = scalar_lea.vmem [#allocation9], %s869
          %871 = dma.done %s867, 256
        $region72: #{tpu_custom_call.1} parent=67 // pred_fallthru
          _
      $region68: #{tpu_custom_call.1} parent=5 // pred_fallthru
        _
    $region6: #{tpu_custom_call.1} parent=1 // loop_footer
      %s22 = sadd.s32 1, %s18
    $region7: #{tpu_custom_call.1} parent=1 // loop_footer_branch
      %17 = sbr.rel target = $region3
    $region8: #{tpu_custom_call.1} parent=1 // loop_exit
      _
    %872 = vsyncpa [#allocation4], 1
    %s873 = scalar_lea.sflag [#allocation4], 1
    %874 = vsyncpa %s873, 1
    %875 = vsyncpa [#allocation7], 1
    %876 = vsyncpa [#allocation5], 1
    %s877 = scalar_lea.sflag [#allocation5], 1
    %878 = vsyncpa %s877, 1

</llo_original>
